<compile_context>
chip_gen: v6e
topology: v6e:2x2x1
jax: 0.10.0
libtpu: 0.0.40
codegen_flags: <defaults>
</compile_context>

<pallas_src>
import numpy as np
import jax
import jax.numpy as jnp
from jax.experimental import pallas as pl
from jax.experimental.pallas import tpu as pltpu


def _decode_kernel(p_ref, scale_ref, off_ref, o_ref):
    """Decode P fused (batch, anchor) planes in one full-width pass.

    p_ref:     VMEM (P, attrs, HW)  raw network outputs (native dtype)
    scale_ref: VMEM (P, attrs, 1)   per-row multiplicative factors:
               row0=stride_w, row1=stride_h, row2=anchor_w_px, row3=anchor_h_px,
               remaining rows = 1
    off_ref:   VMEM (1, attrs, HW)  per-row additive offsets:
               row0=grid_x, row1=grid_y, remaining rows = 0
    o_ref:     VMEM (P, attrs, HW)  decoded [cx, cy, w, h, conf, cls...]
    """
    p = p_ref[...].astype(jnp.float32)
    sig = jax.nn.sigmoid(p)          # full tile: x, y, conf, cls rows
    ex = jnp.exp(p)                  # full tile; only rows 2,3 are selected
    attrs = p.shape[1]
    row = jax.lax.broadcasted_iota(jnp.int32, (1, attrs, 1), 1)
    is_wh = jnp.logical_and(row >= 2, row <= 3)
    decoded = jnp.where(is_wh, ex, sig + off_ref[...]) * scale_ref[...]
    o_ref[...] = decoded.astype(o_ref.dtype)


def _planes_per_block(planes, attrs, hw, in_itemsize, vmem_budget_bytes=8 << 20):
    """Largest divisor of `planes` that fits the VMEM budget and keeps grid>=2."""
    per_plane = attrs * hw * (in_itemsize + 4)            # input + f32 output
    cap = max(1, vmem_budget_bytes // (2 * per_plane))    # 2x: double buffering
    if planes >= 2:
        cap = min(cap, planes // 2)    # keep >=2 grid steps (v7x: 2 TCs/chip)
    best = 1
    for d in range(1, planes + 1):
        if planes % d == 0 and d <= cap:
            best = d
    return int(best)


def decode_box(inp, anchors, num_classes, img_size):
    """Pallas equivalent of DecodeBox.forward.

    inp:      (B, A*(5+num_classes), H, W)  NCHW, native dtype (f32 or bf16)
    anchors:  (A, 2) -- (anchor_w, anchor_h) in image pixels
    returns:  (B, A*H*W, 5+num_classes) float32
    """
    B, C, H, W = inp.shape
    A = anchors.shape[0]
    attrs = 5 + num_classes
    assert C == A * attrs, "channel dim must equal num_anchors * (5+num_classes)"
    HW = H * W
    planes = B * A

    stride_h = img_size[1] / H
    stride_w = img_size[0] / W
    stride_vec = jnp.array([stride_w, stride_h], jnp.float32)

    # (B*A, attrs, HW) view of the predictions; keep native dtype through HBM.
    p = inp.reshape(planes, attrs, HW)

    # Per-plane multiplicative table (planes, attrs, 1).
    scaled_anchors = anchors.astype(jnp.float32) / stride_vec     # (A, 2)
    anchor_px = scaled_anchors * stride_vec                       # same rounding as torch
    row_scale = jnp.ones((A, attrs), jnp.float32)
    row_scale = row_scale.at[:, 0].set(jnp.float32(stride_w))
    row_scale = row_scale.at[:, 1].set(jnp.float32(stride_h))
    row_scale = row_scale.at[:, 2].set(anchor_px[:, 0])
    row_scale = row_scale.at[:, 3].set(anchor_px[:, 1])
    scale = jnp.tile(row_scale, (B, 1)).reshape(planes, attrs, 1)

    # Shared additive offset plane (1, attrs, HW): row0 = grid_x, row1 = grid_y.
    gx = jnp.tile(jnp.arange(W, dtype=jnp.float32)[None, :], (H, 1)).reshape(-1)
    gy = jnp.tile(jnp.arange(H, dtype=jnp.float32)[:, None], (1, W)).reshape(-1)
    off = (jnp.zeros((1, attrs, HW), jnp.float32)
           .at[0, 0, :].set(gx)
           .at[0, 1, :].set(gy))

    P = _planes_per_block(planes, attrs, HW, inp.dtype.itemsize)

    n = planes * attrs * HW
    cost = pl.CostEstimate(
        flops=3 * n,
        transcendentals=2 * n,
        bytes_accessed=n * (inp.dtype.itemsize + 4) + scale.size * 4 + off.size * 4,
    )

    out = pl.pallas_call(
        _decode_kernel,
        out_shape=jax.ShapeDtypeStruct((planes, attrs, HW), jnp.float32),
        grid=(planes // P,),
        in_specs=[
            pl.BlockSpec((P, attrs, HW), lambda i: (i, 0, 0)),   # predictions
            pl.BlockSpec((P, attrs, 1), lambda i: (i, 0, 0)),    # per-plane scales
            pl.BlockSpec((1, attrs, HW), lambda i: (0, 0, 0)),   # grid offsets (fetched once)
        ],
        out_specs=pl.BlockSpec((P, attrs, HW), lambda i: (i, 0, 0)),
        compiler_params=pltpu.CompilerParams(
            dimension_semantics=("parallel",)),
        cost_estimate=cost,
    )(p, scale, off)

    # Relayout to the PyTorch output format (B, A*H*W, attrs).  attrs is tiny
    # (<128), so doing this inside the kernel would force lane-sparse stores;
    # a single XLA transpose of the lane-dense kernel output is cheaper.
    out = out.reshape(B, A, attrs, HW).transpose(0, 1, 3, 2)
    return out.reshape(B, A * HW, attrs)


def decode_box_ref(inp, anchors, num_classes, img_size):
    """NumPy reference reproducing the PyTorch forward exactly."""
    inp = np.asarray(inp, np.float32)
    anchors = np.asarray(anchors, np.float32)
    B, C, H, W = inp.shape
    A = anchors.shape[0]
    attrs = 5 + num_classes
    stride_h = img_size[1] / H
    stride_w = img_size[0] / W
    scaled = anchors / np.array([stride_w, stride_h], np.float32)

    pred = inp.reshape(B, A, attrs, H, W).transpose(0, 1, 3, 4, 2)
    sig = lambda v: 1.0 / (1.0 + np.exp(-v))
    x, y = sig(pred[..., 0]), sig(pred[..., 1])
    tw, th = pred[..., 2], pred[..., 3]
    conf, cls = sig(pred[..., 4]), sig(pred[..., 5:])

    gx = np.tile(np.arange(W, dtype=np.float32)[None, :], (H, 1))
    gy = np.tile(np.arange(H, dtype=np.float32)[:, None], (1, W))
    aw = scaled[:, 0][None, :, None, None]
    ah = scaled[:, 1][None, :, None, None]

    boxes = np.stack(
        [(x + gx) * stride_w,
         (y + gy) * stride_h,
         np.exp(tw) * aw * stride_w,
         np.exp(th) * ah * stride_h], axis=-1)
    return np.concatenate(
        [boxes.reshape(B, -1, 4),
         conf.reshape(B, -1, 1),
         cls.reshape(B, -1, num_classes)], axis=-1)


if __name__ == "__main__":
    B, A, num_classes, H, W = 2, 3, 4, 16, 16
    attrs = 5 + num_classes
    img_size = (128, 128)  # (img_w, img_h) -> stride 8

    # deterministic "parameters": anchor boxes in image pixels
    anchors = jnp.array([[16.0, 16.0], [32.0, 64.0], [64.0, 32.0]], jnp.float32)

    key = jax.random.PRNGKey(0)
    inp = jax.random.normal(key, (B, A * attrs, H, W), dtype=jnp.float32)

    out = decode_box(inp, anchors, num_classes, img_size)
    out = jax.block_until_ready(out)

    ref = decode_box_ref(np.asarray(inp), np.asarray(anchors),
                         num_classes, img_size)
    assert out.shape == (B, A * H * W, attrs), out.shape
    np.testing.assert_allclose(np.asarray(out), ref, rtol=1e-5, atol=1e-5)
    print("KERNEL_OK")
</pallas_src>

<mosaic_0001>
module attributes {stable_mosaic.version = 11 : i64} {
  func.func @_decode_kernel(%arg0: i32, %arg1: memref<3x9x256xf32, #tpu.memory_space<vmem>>, %arg2: memref<3x9x1xf32, #tpu.memory_space<vmem>>, %arg3: memref<1x9x256xf32, #tpu.memory_space<vmem>>, %arg4: memref<3x9x256xf32, #tpu.memory_space<vmem>>) attributes {dimension_semantics = [#tpu.dimension_semantics<parallel>], iteration_bounds = array<i64: 2>, scalar_prefetch = 0 : i64, scratch_operands = 0 : i64, tpu.core_type = #tpu.core_type<tc>, window_params = [{transform_indices = @transform_0, window_bounds = array<i64: 3, 9, 256>}, {transform_indices = @transform_1, window_bounds = array<i64: 3, 9, 1>}, {pipeline_mode = #tpu.pipeline_mode<synchronous>, transform_indices = @transform_2, window_bounds = array<i64: 1, 9, 256>}, {transform_indices = @transform_3, window_bounds = array<i64: 3, 9, 256>}]} {
    %c0 = arith.constant 0 : index
    %c0_0 = arith.constant 0 : index
    %c0_1 = arith.constant 0 : index
    %0 = vector.load %arg1[%c0, %c0_0, %c0_1] : memref<3x9x256xf32, #tpu.memory_space<vmem>>, vector<3x9x256xf32>
    %1 = arith.negf %0 : vector<3x9x256xf32>
    %2 = math.exp %1 : vector<3x9x256xf32>
    %cst = arith.constant 1.000000e+00 : f32
    %3 = vector.broadcast %cst : f32 to vector<3x9x256xf32>
    %4 = arith.addf %3, %2 : vector<3x9x256xf32>
    %5 = arith.divf %3, %4 : vector<3x9x256xf32>
    %6 = math.exp %0 : vector<3x9x256xf32>
    %7 = tpu.iota {dimensions = array<i32: 1>} : vector<1x9x1xi32>
    %c2_i32 = arith.constant 2 : i32
    %8 = vector.broadcast %c2_i32 : i32 to vector<1x9x1xi32>
    %9 = arith.cmpi sge, %7, %8 : vector<1x9x1xi32>
    %c3_i32 = arith.constant 3 : i32
    %10 = vector.broadcast %c3_i32 : i32 to vector<1x9x1xi32>
    %11 = arith.cmpi sle, %7, %10 : vector<1x9x1xi32>
    %12 = arith.andi %9, %11 : vector<1x9x1xi1>
    %c0_2 = arith.constant 0 : index
    %c0_3 = arith.constant 0 : index
    %c0_4 = arith.constant 0 : index
    %13 = vector.load %arg3[%c0_2, %c0_3, %c0_4] : memref<1x9x256xf32, #tpu.memory_space<vmem>>, vector<1x9x256xf32>
    %14 = vector.broadcast %13 : vector<1x9x256xf32> to vector<3x9x256xf32>
    %15 = arith.addf %5, %14 : vector<3x9x256xf32>
    %16 = vector.shape_cast %12 : vector<1x9x1xi1> to vector<1x9x1xi1>
    %17 = vector.broadcast %16 : vector<1x9x1xi1> to vector<3x9x256xi1>
    %18 = arith.select %17, %6, %15 : vector<3x9x256xi1>, vector<3x9x256xf32>
    %c0_5 = arith.constant 0 : index
    %c0_6 = arith.constant 0 : index
    %c0_7 = arith.constant 0 : index
    %19 = vector.load %arg2[%c0_5, %c0_6, %c0_7] : memref<3x9x1xf32, #tpu.memory_space<vmem>>, vector<3x9x1xf32>
    %20 = vector.broadcast %19 : vector<3x9x1xf32> to vector<3x9x256xf32>
    %21 = arith.mulf %18, %20 : vector<3x9x256xf32>
    %c0_8 = arith.constant 0 : index
    %c0_9 = arith.constant 0 : index
    %c0_10 = arith.constant 0 : index
    %22 = vector.load %arg4[%c0_8, %c0_9, %c0_10] : memref<3x9x256xf32, #tpu.memory_space<vmem>>, vector<3x9x256xf32>
    tpu.vector_store %arg4[%c0_8, %c0_9, %c0_10], %21 {strides = array<i32>} : memref<3x9x256xf32, #tpu.memory_space<vmem>>, vector<3x9x256xf32>,
    return
  }
  func.func @transform_0(%arg0: i32) -> (i32, i32, i32) {
    %c0_i32 = arith.constant 0 : i32
    %c0_i32_0 = arith.constant 0 : i32
    %c0_i32_1 = arith.constant 0 : i32
    return %arg0, %c0_i32, %c0_i32_0 : i32, i32, i32
  }
  func.func @transform_1(%arg0: i32) -> (i32, i32, i32) {
    %c0_i32 = arith.constant 0 : i32
    %c0_i32_0 = arith.constant 0 : i32
    %c0_i32_1 = arith.constant 0 : i32
    return %arg0, %c0_i32, %c0_i32_0 : i32, i32, i32
  }
  func.func @transform_2(%arg0: i32) -> (i32, i32, i32) {
    %c0_i32 = arith.constant 0 : i32
    %c0_i32_0 = arith.constant 0 : i32
    %c0_i32_1 = arith.constant 0 : i32
    %c0_i32_2 = arith.constant 0 : i32
    return %c0_i32, %c0_i32_0, %c0_i32_1 : i32, i32, i32
  }
  func.func @transform_3(%arg0: i32) -> (i32, i32, i32) {
    %c0_i32 = arith.constant 0 : i32
    %c0_i32_0 = arith.constant 0 : i32
    %c0_i32_1 = arith.constant 0 : i32
    return %arg0, %c0_i32, %c0_i32_0 : i32, i32, i32
  }
}

</mosaic_0001>

<llo_original>
// kernel: tpu_custom_call.1
$region0: #{tpu_custom_call.1}
  #allocation0 [shape = 'u32[]', space=smem, size = 0x4, offset = 0x4, fixed_abs, tag = 'smem constant byte address 0x4 - core index']
  #allocation1 [shape = 'u32[144,128]{1,0:T(1,128)}', space=vmem, size = 0x12000, scoped, tag = 'internal scratch']
  %s0 = inlined_call_operand.vmem [shape: f32[6,9,256], index: 0, kind: input, shape index: {}]
  %s1 = inlined_call_operand.vmem [shape: f32[6,9,1], index: 1, kind: input, shape index: {}]
  %s2 = inlined_call_operand.vmem [shape: f32[1,9,256], index: 2, kind: input, shape index: {}]
  %s3 = inlined_call_operand.vmem [shape: f32[6,9,256], index: 3, kind: output, shape index: {}]
  %s4 = sld [smem:[#allocation0]]
  $region45: #{tpu_custom_call.1} parent=0
    _
  %s6 = ssub.s32 1, %s4
  %s7 = scalar_select 0, %s6, %s4
  loop: start=0, step=1, limit=4
  $region2: #{tpu_custom_call.1} parent=0 // loop_pre_header
    _
  $region3: #{tpu_custom_call.1} parent=0 // loop_header
    %s9 = sphi 0, %s13
    %p10 = scmp.ge.s32.totalorder %s9, 4
    %s19 = sphi 0, %s21
    %s22 = sphi 0, %s19
    %s23 = sphi 0, %s22
    %s39 = sphi 0, %s23
    %s45 = sphi 0, %s47
    %s48 = sphi 0, %s45
    %s49 = sphi 0, %s48
    %s65 = sphi 0, %s49
    %s69 = sphi 0, %s69
    %s71 = sphi 0, %s69
    %s72 = sphi 0, %s71
    %s86 = sphi 0, %s72
    %s92 = sphi 0, %s94
    %s95 = sphi 0, %s92
    %s96 = sphi 0, %s95
    %s112 = sphi 0, %s96
  $region4: #{tpu_custom_call.1} parent=0 // loop_header_branch
    %12 = sbr.rel (%p10) target = $region8
  $region5: #{tpu_custom_call.1} parent=0 // loop_body
    %s14 = ssub.s32 %s9, 1
    %s15 = ssub.s32 %s9, 2
    %s16 = sadd.s32 %s9, 1
    %s17 = ssub.s32 %s9, %s16
    %p18 = scmp.eq.s32.totalorder %s17, 0
    %s20 = sadd.s32 %s19, 1
    %s21 = scalar_select %p18, %s19, %s20
    %p24 = pneg %p18
    %p25 = scmp.eq.s32.totalorder %s9, 1
    %p26 = por %p24, %p25
    %p27 = scmp.ne.s32.totalorder %s19, %s22
    %p28 = scmp.eq.s32.totalorder %s9, 0
    %p29 = por %p27, %p28
    %p30 = scmp.ne.s32.totalorder %s19, %s22
    %p31 = scmp.eq.s32.totalorder %s14, 1
    %p32 = por %p30, %p31
    %p33 = scmp.ne.s32.totalorder %s22, %s23
    %p34 = scmp.eq.s32.totalorder %s14, 0
    %p35 = por %p33, %p34
    %p36 = scmp.ne.s32.totalorder %s22, %s23
    %p37 = scmp.eq.s32.totalorder %s15, 1
    %p38 = por %p36, %p37
    %p40 = scmp.ne.s32.totalorder %s23, %s39
    %p41 = scmp.eq.s32.totalorder %s15, 0
    %p42 = por %p40, %p41
    %s43 = ssub.s32 %s9, %s16
    %p44 = scmp.eq.s32.totalorder %s43, 0
    %s46 = sadd.s32 %s45, 1
    %s47 = scalar_select %p44, %s45, %s46
    %p50 = pneg %p44
    %p51 = scmp.eq.s32.totalorder %s9, 1
    %p52 = por %p50, %p51
    %p53 = scmp.ne.s32.totalorder %s45, %s48
    %p54 = scmp.eq.s32.totalorder %s9, 0
    %p55 = por %p53, %p54
    %p56 = scmp.ne.s32.totalorder %s45, %s48
    %p57 = scmp.eq.s32.totalorder %s14, 1
    %p58 = por %p56, %p57
    %p59 = scmp.ne.s32.totalorder %s48, %s49
    %p60 = scmp.eq.s32.totalorder %s14, 0
    %p61 = por %p59, %p60
    %p62 = scmp.ne.s32.totalorder %s48, %s49
    %p63 = scmp.eq.s32.totalorder %s15, 1
    %p64 = por %p62, %p63
    %p66 = scmp.ne.s32.totalorder %s49, %s65
    %p67 = scmp.eq.s32.totalorder %s15, 0
    %p68 = por %p66, %p67
    %s70 = sadd.s32 %s69, 1
    %p73 = scmp.eq.s32.totalorder %s9, 1
    %p74 = scmp.ne.s32.totalorder %s69, %s71
    %p75 = scmp.eq.s32.totalorder %s9, 0
    %p76 = por %p74, %p75
    %p77 = scmp.ne.s32.totalorder %s69, %s71
    %p78 = scmp.eq.s32.totalorder %s14, 1
    %p79 = por %p77, %p78
    %p80 = scmp.ne.s32.totalorder %s71, %s72
    %p81 = scmp.eq.s32.totalorder %s14, 0
    %p82 = por %p80, %p81
    %p83 = scmp.ne.s32.totalorder %s71, %s72
    %p84 = scmp.eq.s32.totalorder %s15, 1
    %p85 = por %p83, %p84
    %p87 = scmp.ne.s32.totalorder %s72, %s86
    %p88 = scmp.eq.s32.totalorder %s15, 0
    %p89 = por %p87, %p88
    %s90 = ssub.s32 %s9, %s16
    %p91 = scmp.eq.s32.totalorder %s90, 0
    %s93 = sadd.s32 %s92, 1
    %s94 = scalar_select %p91, %s92, %s93
    %p97 = pneg %p91
    %p98 = scmp.eq.s32.totalorder %s9, 1
    %p99 = por %p97, %p98
    %p100 = scmp.ne.s32.totalorder %s92, %s95
    %p101 = scmp.eq.s32.totalorder %s9, 0
    %p102 = por %p100, %p101
    %p103 = scmp.ne.s32.totalorder %s92, %s95
    %p104 = scmp.eq.s32.totalorder %s14, 1
    %p105 = por %p103, %p104
    %p106 = scmp.ne.s32.totalorder %s95, %s96
    %p107 = scmp.eq.s32.totalorder %s14, 0
    %p108 = por %p106, %p107
    %p109 = scmp.ne.s32.totalorder %s95, %s96
    %p110 = scmp.eq.s32.totalorder %s15, 1
    %p111 = por %p109, %p110
    %p113 = scmp.ne.s32.totalorder %s96, %s112
    %p114 = scmp.eq.s32.totalorder %s15, 0
    %p115 = por %p113, %p114
    %p116 = scmp.le.s32.totalorder 1, %s9
    %p117 = scmp.lt.s32.totalorder %s9, 3
    %p118 = pnand %p116, %p117
    %p119 = pneg %p118
    // Predicated region
    $region9: #{tpu_custom_call.1} parent=5 // pred_check
      _
    $region10: #{tpu_custom_call.1} parent=5 // pred_check_branch
      %121 = sbr.rel (%p118) target = $region12
    $region11: #{tpu_custom_call.1} parent=5 // pred_region
      %s122 = ssub.s32 %s9, 1
      // Predicated region
      $region13: #{tpu_custom_call.1} parent=11 // pred_check
        %p123 = pneg %p82
      $region14: #{tpu_custom_call.1} parent=11 // pred_check_branch
        %125 = sbr.rel (%p123) target = $region16
      $region15: #{tpu_custom_call.1} parent=11 // pred_region
        _
      $region16: #{tpu_custom_call.1} parent=11 // pred_fallthru
        _
    $region12: #{tpu_custom_call.1} parent=5 // pred_fallthru
      _
    %p126 = scmp.lt.s32.totalorder %s9, 2
    // Predicated region
    $region17: #{tpu_custom_call.1} parent=5 // pred_check
      %p127 = pneg %p126
    $region18: #{tpu_custom_call.1} parent=5 // pred_check_branch
      %129 = sbr.rel (%p127) target = $region20
    $region19: #{tpu_custom_call.1} parent=5 // pred_region
      // Predicated region
      $region21: #{tpu_custom_call.1} parent=19 // pred_check
        %p130 = pneg %p29
      $region22: #{tpu_custom_call.1} parent=19 // pred_check_branch
        %132 = sbr.rel (%p130) target = $region24
      $region23: #{tpu_custom_call.1} parent=19 // pred_region
        %s133 = smul.u32 3, %s9
        %p134 = scmp.lt.s32.totalorder %s133, 5
        %s135 = scalar_select %p134, %s133, 5
        %s136 = smul.addr %s135, 4
        %s137 = smul.addr %s136, 8
        %s138 = scalar_lea.vmem %s0, %s137
        %s139 = smul.u32 3, %s9
      $region24: #{tpu_custom_call.1} parent=19 // pred_fallthru
        _
      // Predicated region
      $region25: #{tpu_custom_call.1} parent=19 // pred_check
        %p140 = pneg %p55
      $region26: #{tpu_custom_call.1} parent=19 // pred_check_branch
        %142 = sbr.rel (%p140) target = $region28
      $region27: #{tpu_custom_call.1} parent=19 // pred_region
        %s143 = smul.u32 3, %s9
        %p144 = scmp.lt.s32.totalorder %s143, 5
        %s145 = scalar_select %p144, %s143, 5
        %s146 = smul.addr %s145, 2
        %s147 = smul.addr %s146, 8
        %s148 = scalar_lea.vmem %s1, %s147
        %s149 = smul.u32 3, %s9
      $region28: #{tpu_custom_call.1} parent=19 // pred_fallthru
        _
    $region20: #{tpu_custom_call.1} parent=5 // pred_fallthru
      _
    %p150 = scmp.le.s32.totalorder 1, %s9
    %p151 = scmp.lt.s32.totalorder %s9, 3
    %p152 = pnand %p150, %p151
    %p153 = pneg %p152
    // Predicated region
    $region29: #{tpu_custom_call.1} parent=5 // pred_check
      _
    $region30: #{tpu_custom_call.1} parent=5 // pred_check_branch
      %155 = sbr.rel (%p152) target = $region32
    $region31: #{tpu_custom_call.1} parent=5 // pred_region
      %s156 = ssub.s32 %s9, 1
      %s157 = smul.u32 3, %s14
      %p158 = scmp.lt.s32.totalorder %s157, 5
      %s159 = scalar_select %p158, %s157, 5
      %s160 = smul.addr %s159, 4
      %s161 = smul.addr %s160, 8
      %s162 = scalar_lea.vmem %s0, %s161
      %p163 = pneg %p35
      %p164 = pneg %p32
      %s165 = smul.u32 3, %s14
      %p166 = scmp.lt.s32.totalorder %s165, 5
      %s167 = scalar_select %p166, %s165, 5
      %s168 = smul.addr %s167, 2
      %s169 = smul.addr %s168, 8
      %s170 = scalar_lea.vmem %s1, %s169
      %p171 = pneg %p61
      %p172 = pneg %p58
      %p173 = pneg %p82
      %p174 = pneg %p79
      %p175 = pneg %p108
      %p176 = pneg %p105
      %s177 = smul.u32 3, %s14
      %p178 = scmp.lt.s32.totalorder %s177, 5
      %s179 = scalar_select %p178, %s177, 5
      %s180 = smul.addr %s179, 4
      %s181 = smul.addr %s180, 8
      %s182 = scalar_lea.vmem %s3, %s181
      %s183 = smul.u32 3, %s14
      %p184 = scmp.lt.s32.totalorder %s183, 5
      %s185 = scalar_select %p184, %s183, 5
      %s186 = smul.addr %s185, 4
      %s187 = smul.addr %s186, 8
      %s188 = scalar_lea.vmem %s0, %s187
      %s189 = smul.u32 3, %s14
      %s190 = smul.u32 3, %s14
      %p191 = scmp.lt.s32.totalorder %s190, 5
      %s192 = scalar_select %p191, %s190, 5
      %s193 = smul.addr %s192, 2
      %s194 = smul.addr %s193, 8
      %s195 = scalar_lea.vmem %s1, %s194
      %s196 = smul.u32 3, %s14
      %s197 = smul.u32 3, %s14
      %p198 = scmp.lt.s32.totalorder %s197, 5
      %s199 = scalar_select %p198, %s197, 5
      %s200 = smul.addr %s199, 4
      %s201 = smul.addr %s200, 8
      %s202 = scalar_lea.vmem %s3, %s201
      %s203 = smul.u32 3, %s14
      %v204 = vld [vmem:[%s188] sm:$0xff]
      %v205 = vld [vmem:[%s188 + $0x8] sm:$0xff]
      %v206 = vld [vmem:[%s188 + $0x10] sm:$0x1]
      %v207 = vld [vmem:[%s188 + $0x18] sm:$0x1]
      %v208 = vld [vmem:[%s188 + $0x20] sm:$0xff]
      %v209 = vld [vmem:[%s188 + $0x28] sm:$0xff]
      %v210 = vld [vmem:[%s188 + $0x30] sm:$0x1]
      %v211 = vld [vmem:[%s188 + $0x38] sm:$0x1]
      %v212 = vld [vmem:[%s188 + $0x40] sm:$0xff]
      %v213 = vld [vmem:[%s188 + $0x48] sm:$0xff]
      %v214 = vld [vmem:[%s188 + $0x50] sm:$0x1]
      %v215 = vld [vmem:[%s188 + $0x58] sm:$0x1]
      %v216 = vxor.u32 %v204, 2147483648
      %v217 = vxor.u32 %v205, 2147483648
      %v218 = vxor.u32 %v206, 2147483648
      %v219 = vxor.u32 %v207, 2147483648
      %v220 = vxor.u32 %v208, 2147483648
      %v221 = vxor.u32 %v209, 2147483648
      %v222 = vxor.u32 %v210, 2147483648
      %v223 = vxor.u32 %v211, 2147483648
      %v224 = vxor.u32 %v212, 2147483648
      %v225 = vxor.u32 %v213, 2147483648
      %v226 = vxor.u32 %v214, 2147483648
      %v227 = vxor.u32 %v215, 2147483648
      %v228 = vmul.f32 %v216, 1.442695
      %v229 = vpow.pop %v228
      %v230 = vmul.f32 %v217, 1.442695
      %v231 = vpow.pop %v230
      %v232 = vmul.f32 %v218, 1.442695
      %v233 = vpow.pop %v232
      %v234 = vmul.f32 %v219, 1.442695
      %v235 = vpow.pop %v234
      %v236 = vmul.f32 %v220, 1.442695
      %v237 = vpow.pop %v236
      %v238 = vmul.f32 %v221, 1.442695
      %v239 = vpow.pop %v238
      %v240 = vmul.f32 %v222, 1.442695
      %v241 = vpow.pop %v240
      %v242 = vmul.f32 %v223, 1.442695
      %v243 = vpow.pop %v242
      %v244 = vmul.f32 %v224, 1.442695
      %v245 = vpow.pop %v244
      %v246 = vmul.f32 %v225, 1.442695
      %v247 = vpow.pop %v246
      %v248 = vmul.f32 %v226, 1.442695
      %v249 = vpow.pop %v248
      %v250 = vmul.f32 %v227, 1.442695
      %v251 = vpow.pop %v250
      %v252 = vadd.f32 %v229, 1.0
      %v253 = vadd.f32 %v231, 1.0
      %v254 = vadd.f32 %v233, 1.0
      %v255 = vadd.f32 %v235, 1.0
      %v256 = vadd.f32 %v237, 1.0
      %v257 = vadd.f32 %v239, 1.0
      %v258 = vadd.f32 %v241, 1.0
      %v259 = vadd.f32 %v243, 1.0
      %v260 = vadd.f32 %v245, 1.0
      %v261 = vadd.f32 %v247, 1.0
      %v262 = vadd.f32 %v249, 1.0
      %v263 = vadd.f32 %v251, 1.0
      %v264 = vrcp.pop %v252
      %v265 = vmul.f32 1.0, %v264
      %v266 = vrcp.pop %v253
      %v267 = vmul.f32 1.0, %v266
      %v268 = vrcp.pop %v254
      %v269 = vmul.f32 1.0, %v268
      %v270 = vrcp.pop %v255
      %v271 = vmul.f32 1.0, %v270
      %v272 = vrcp.pop %v256
      %v273 = vmul.f32 1.0, %v272
      %v274 = vrcp.pop %v257
      %v275 = vmul.f32 1.0, %v274
      %v276 = vrcp.pop %v258
      %v277 = vmul.f32 1.0, %v276
      %v278 = vrcp.pop %v259
      %v279 = vmul.f32 1.0, %v278
      %v280 = vrcp.pop %v260
      %v281 = vmul.f32 1.0, %v280
      %v282 = vrcp.pop %v261
      %v283 = vmul.f32 1.0, %v282
      %v284 = vrcp.pop %v262
      %v285 = vmul.f32 1.0, %v284
      %v286 = vrcp.pop %v263
      %v287 = vmul.f32 1.0, %v286
      %v288 = vmul.f32 %v204, 1.442695
      %v289 = vpow.pop %v288
      %v290 = vmul.f32 %v205, 1.442695
      %v291 = vpow.pop %v290
      %v292 = vmul.f32 %v206, 1.442695
      %v293 = vpow.pop %v292
      %v294 = vmul.f32 %v207, 1.442695
      %v295 = vpow.pop %v294
      %v296 = vmul.f32 %v208, 1.442695
      %v297 = vpow.pop %v296
      %v298 = vmul.f32 %v209, 1.442695
      %v299 = vpow.pop %v298
      %v300 = vmul.f32 %v210, 1.442695
      %v301 = vpow.pop %v300
      %v302 = vmul.f32 %v211, 1.442695
      %v303 = vpow.pop %v302
      %v304 = vmul.f32 %v212, 1.442695
      %v305 = vpow.pop %v304
      %v306 = vmul.f32 %v213, 1.442695
      %v307 = vpow.pop %v306
      %v308 = vmul.f32 %v214, 1.442695
      %v309 = vpow.pop %v308
      %v310 = vmul.f32 %v215, 1.442695
      %v311 = vpow.pop %v310
      %v312 = vlaneseq
      %v313 = vshrl.u32 %v312, 7
      %v314 = vadd.s32 %v313, 8
      %vm315 = vcmp.ge.s32.totalorder %v313, 2
      %vm316 = vcmp.ge.s32.totalorder %v314, 2
      %vm317 = vcmp.le.s32.totalorder %v313, 3
      %vm318 = vcmp.le.s32.totalorder %v314, 3
      %vm319 = vmand %vm315, %vm317
      %vm320 = vmand %vm316, %vm318
      %v321 = vld [vmem:[%s2] sm:$0xff]
      %v322 = vld [vmem:[%s2 + $0x8] sm:$0xff]
      %v323 = vld [vmem:[%s2 + $0x10] sm:$0x1]
      %v324 = vld [vmem:[%s2 + $0x18] sm:$0x1]
      %v325 = vadd.f32 %v265, %v321
      %v326 = vadd.f32 %v267, %v322
      %v327 = vadd.f32 %v269, %v323
      %v328 = vadd.f32 %v271, %v324
      %v329 = vadd.f32 %v273, %v321
      %v330 = vadd.f32 %v275, %v322
      %v331 = vadd.f32 %v277, %v323
      %v332 = vadd.f32 %v279, %v324
      %v333 = vadd.f32 %v281, %v321
      %v334 = vadd.f32 %v283, %v322
      %v335 = vadd.f32 %v285, %v323
      %v336 = vadd.f32 %v287, %v324
      %v337 = vsel %vm319, 1, 0
      %v338 = vsel %vm320, 1, 0
      %vm339 = vcmp.eq.s32.totalorder %v337, 1
      %vm340 = vcmp.eq.s32.totalorder %v338, 1
      %v341 = vsel %vm339, %v289, %v325
      %v342 = vsel %vm339, %v291, %v326
      %v343 = vsel %vm340, %v293, %v327
      %v344 = vsel %vm340, %v295, %v328
      %v345 = vsel %vm339, %v297, %v329
      %v346 = vsel %vm339, %v299, %v330
      %v347 = vsel %vm340, %v301, %v331
      %v348 = vsel %vm340, %v303, %v332
      %v349 = vsel %vm339, %v305, %v333
      %v350 = vsel %vm339, %v307, %v334
      %v351 = vsel %vm340, %v309, %v335
      %v352 = vsel %vm340, %v311, %v336
      %v353 = vld [vmem:[%s195] sm:$0xff]
      %v354 = vld [vmem:[%s195 + $0x8] sm:$0x1]
      %v355 = vld [vmem:[%s195 + $0x10] sm:$0xff]
      %v356 = vld [vmem:[%s195 + $0x18] sm:$0x1]
      %v357 = vld [vmem:[%s195 + $0x20] sm:$0xff]
      %v358 = vld [vmem:[%s195 + $0x28] sm:$0x1]
      %360 = vset.pattern.permute.xlu0 0
      %361 = vperm.xlu0 %360, %v353
      %v362 = vpop.permute.xlu0 %361
      %365 = vset.pattern.permute.xlu0 0
      %366 = vperm.xlu0 %365, %v354
      %v367 = vpop.permute.xlu0 %366
      %370 = vset.pattern.permute.xlu0 0
      %371 = vperm.xlu0 %370, %v355
      %v372 = vpop.permute.xlu0 %371
      %375 = vset.pattern.permute.xlu0 0
      %376 = vperm.xlu0 %375, %v356
      %v377 = vpop.permute.xlu0 %376
      %380 = vset.pattern.permute.xlu0 0
      %381 = vperm.xlu0 %380, %v357
      %v382 = vpop.permute.xlu0 %381
      %385 = vset.pattern.permute.xlu0 0
      %386 = vperm.xlu0 %385, %v358
      %v387 = vpop.permute.xlu0 %386
      %v389 = vmul.f32 %v341, %v362
      %v390 = vmul.f32 %v342, %v362
      %v391 = vmul.f32 %v343, %v367
      %v392 = vmul.f32 %v344, %v367
      %v393 = vmul.f32 %v345, %v372
      %v394 = vmul.f32 %v346, %v372
      %v395 = vmul.f32 %v347, %v377
      %v396 = vmul.f32 %v348, %v377
      %v397 = vmul.f32 %v349, %v382
      %v398 = vmul.f32 %v350, %v382
      %v399 = vmul.f32 %v351, %v387
      %v400 = vmul.f32 %v352, %v387
      %401 = vst [vmem:[%s202] sm:$0xff] %v389
      %402 = vst [vmem:[%s202 + $0x8] sm:$0xff] %v390
      %403 = vst [vmem:[%s202 + $0x10] sm:$0x1] %v391
      %404 = vst [vmem:[%s202 + $0x18] sm:$0x1] %v392
      %405 = vst [vmem:[%s202 + $0x20] sm:$0xff] %v393
      %406 = vst [vmem:[%s202 + $0x28] sm:$0xff] %v394
      %407 = vst [vmem:[%s202 + $0x30] sm:$0x1] %v395
      %408 = vst [vmem:[%s202 + $0x38] sm:$0x1] %v396
      %409 = vst [vmem:[%s202 + $0x40] sm:$0xff] %v397
      %410 = vst [vmem:[%s202 + $0x48] sm:$0xff] %v398
      %411 = vst [vmem:[%s202 + $0x50] sm:$0x1] %v399
      %412 = vst [vmem:[%s202 + $0x58] sm:$0x1] %v400
      %s413 = smul.u32 3, %s14
      %p414 = scmp.lt.s32.totalorder %s413, 5
      %s415 = scalar_select %p414, %s413, 5
      %s416 = smul.addr %s415, 4
      %s417 = smul.addr %s416, 8
      %s418 = scalar_lea.vmem %s3, %s417
      // Predicated region
      $region33: #{tpu_custom_call.1} parent=31 // pred_check
        %p419 = pneg %p105
      $region34: #{tpu_custom_call.1} parent=31 // pred_check_branch
        %421 = sbr.rel (%p419) target = $region36
      $region35: #{tpu_custom_call.1} parent=31 // pred_region
        %s422 = smul.u32 3, %s14
      $region36: #{tpu_custom_call.1} parent=31 // pred_fallthru
        _
    $region32: #{tpu_custom_call.1} parent=5 // pred_fallthru
      _
    %p423 = scmp.le.s32.totalorder 2, %s9
    // Predicated region
    $region37: #{tpu_custom_call.1} parent=5 // pred_check
      %p424 = pneg %p423
    $region38: #{tpu_custom_call.1} parent=5 // pred_check_branch
      %426 = sbr.rel (%p424) target = $region40
    $region39: #{tpu_custom_call.1} parent=5 // pred_region
      %s427 = ssub.s32 %s9, 2
      // Predicated region
      $region41: #{tpu_custom_call.1} parent=39 // pred_check
        %p428 = pneg %p111
      $region42: #{tpu_custom_call.1} parent=39 // pred_check_branch
        %430 = sbr.rel (%p428) target = $region44
      $region43: #{tpu_custom_call.1} parent=39 // pred_region
        %s431 = smul.u32 3, %s15
        %p432 = scmp.lt.s32.totalorder %s431, 5
        %s433 = scalar_select %p432, %s431, 5
        %s434 = smul.addr %s433, 4
        %s435 = smul.addr %s434, 8
        %s436 = scalar_lea.vmem %s3, %s435
      $region44: #{tpu_custom_call.1} parent=39 // pred_fallthru
        _
    $region40: #{tpu_custom_call.1} parent=5 // pred_fallthru
      _
  $region6: #{tpu_custom_call.1} parent=0 // loop_footer
    %s13 = sadd.s32 1, %s9
  $region7: #{tpu_custom_call.1} parent=0 // loop_footer_branch
    %8 = sbr.rel target = $region3
  $region8: #{tpu_custom_call.1} parent=0 // loop_exit
    _

</llo_original>
